<compile_context>
chip_gen: v6e
topology: v6e:2x2x1
jax: 0.10.0
libtpu: 0.0.40
codegen_flags: <defaults>
</compile_context>

<pallas_src>
import functools

import jax
import jax.numpy as jnp
from jax import lax
from jax.experimental import pallas as pl
from jax.experimental.pallas import tpu as pltpu

_COMPUTE_DTYPE = jnp.bfloat16          # streaming dtype; accumulation stays f32
_BN_EPS = 1e-5
_LANE_CHUNK = 512                      # lanes of output produced per MXU matmul


@functools.lru_cache(maxsize=None)
def _vmem_limit_bytes():
    cap = 64 * 1024 * 1024
    try:
        cap = int(getattr(pltpu.get_tpu_info(), "vmem_capacity_bytes", cap))
    except Exception:
        pass
    # ~75% of physical VMEM, never below 32 MiB, never above 100 MiB.
    return max(32 * 1024 * 1024, min((cap * 3) // 4, 100 * 1024 * 1024))


# ----------------------------------------------------------------------------
# Kernel 1: direct convolution, taps folded into the contraction.
#   x_ref : (1, planes*Cin, Hq*Wq)  channel-major, pixel-flattened padded image
#   w_ref : (Cout, T*Cin)           tap-stacked weight matrix
#   b_ref : (Cout, 1)               f32 bias
#   o_ref : (1, Cout, Lout)         pixels on lanes (lane-dense)
# Per output-lane chunk: concatenate the T tap slices on sublanes and issue a
# single (Cout, T*Cin) @ (T*Cin, chunk) MXU matmul with f32 accumulation.
# ----------------------------------------------------------------------------
def _conv_stacked_kernel(x_ref, w_ref, b_ref, o_ref, *, taps, cin, lout, relu,
                         chunk):
    w = w_ref[...]
    b = b_ref[...]

    def emit(start, size):
        parts = [x_ref[0, plane * cin:(plane + 1) * cin, pl.ds(start + off, size)]
                 for plane, off in taps]
        xs = jnp.concatenate(parts, axis=0) if len(parts) > 1 else parts[0]
        acc = jnp.dot(w, xs, preferred_element_type=jnp.float32) + b
        if relu:
            acc = jnp.maximum(acc, 0.0)
        o_ref[0, :, pl.ds(start, size)] = acc.astype(o_ref.dtype)

    n_full = lout // chunk
    rem = lout - n_full * chunk
    if n_full > 0:
        if n_full <= 8:
            for i in range(n_full):
                emit(i * chunk, chunk)
        else:
            def body(i, carry):
                emit(pl.multiple_of(i * chunk, chunk), chunk)
                return carry
            lax.fori_loop(0, n_full, body, 0)
    if rem > 0:
        emit(n_full * chunk, rem)


def conv2d_direct(x, w, b, *, stride, padding, relu, out_dtype=None):
    """NCHW conv.  x:(N,Cin,H,W)  w:(Cout,Cin,KH,KW)  b:(Cout,)."""
    N, Cin, H, W = x.shape
    Cout, Cin_w, KH, KW = w.shape
    assert Cin_w == Cin
    out_dtype = out_dtype or x.dtype

    # Pad channels to a sublane multiple (only the 3-channel RGB stem needs it).
    cpad = (-Cin) % 8
    if cpad:
        x = jnp.pad(x, ((0, 0), (0, cpad), (0, 0), (0, 0)))
        w = jnp.pad(w, ((0, 0), (0, cpad), (0, 0), (0, 0)))
        Cin += cpad

    if stride == 1:
        extra = 1 if KH * KW > 1 else 0   # spare zero row keeps tap slices in-bounds
        xp = jnp.pad(x, ((0, 0), (0, 0), (padding, padding + extra),
                         (padding, padding)))
        Hq, Wq = H + 2 * padding + extra, W + 2 * padding
        Ho, Wo = H + 2 * padding - KH + 1, W + 2 * padding - KW + 1
        planes = 1
        x_flat = xp.reshape(N, Cin, Hq * Wq)
        taps = tuple((0, kh * Wq + kw) for kh in range(KH) for kw in range(KW))
    elif stride == 2:
        assert KH == 5 and KW == 5 and padding == 2 and H % 2 == 0 and W % 2 == 0
        xp = jnp.pad(x, ((0, 0), (0, 0), (2, 4), (2, 2)))   # extra bottom rows
        Hq, Wq = H // 2 + 3, W // 2 + 2
        Ho, Wo = H // 2, W // 2
        planes = 4
        parity = [xp[:, :, ph::2, pw::2] for ph in (0, 1) for pw in (0, 1)]
        x_flat = jnp.stack(parity, axis=1).reshape(N, planes * Cin, Hq * Wq)
        taps = tuple(((kh % 2) * 2 + (kw % 2), (kh // 2) * Wq + (kw // 2))
                     for kh in range(KH) for kw in range(KW))
    else:
        raise NotImplementedError(f"stride={stride}")

    T = KH * KW
    Lout = Ho * Wq
    chunk = min(Lout, _LANE_CHUNK)
    # Weight rows ordered (kh, kw, cin) to match the in-kernel tap concatenation.
    w2 = w.transpose(0, 2, 3, 1).reshape(Cout, T * Cin).astype(x.dtype)
    b2 = b.reshape(Cout, 1).astype(jnp.float32)

    out_flat = pl.pallas_call(
        functools.partial(_conv_stacked_kernel, taps=taps, cin=Cin, lout=Lout,
                          relu=relu, chunk=chunk),
        out_shape=jax.ShapeDtypeStruct((N, Cout, Lout), out_dtype),
        grid=(N,),
        in_specs=[
            pl.BlockSpec((1, planes * Cin, Hq * Wq), lambda n: (n, 0, 0)),
            pl.BlockSpec((Cout, T * Cin), lambda n: (0, 0)),
            pl.BlockSpec((Cout, 1), lambda n: (0, 0)),
        ],
        out_specs=pl.BlockSpec((1, Cout, Lout), lambda n: (n, 0, 0)),
        compiler_params=pltpu.CompilerParams(
            dimension_semantics=("parallel",),
            vmem_limit_bytes=_vmem_limit_bytes()),
    )(x_flat, w2, b2)

    # Drop the padded-row-pitch garbage columns.
    return out_flat.reshape(N, Cout, Ho, Wq)[:, :, :, :Wo]


# ----------------------------------------------------------------------------
# Kernel 2: fused (align_corners=True bilinear 2x upsample + lateral add).
# The separable resize is two BATCHED matmuls over the channel axis (no
# per-channel Python loop, no in-kernel transposes/reshapes).
# ----------------------------------------------------------------------------
def _upsample_add_kernel(coarse_ref, lat_ref, ah_ref, awt_ref, o_ref):
    C, Hc, Wc = coarse_ref.shape[1], coarse_ref.shape[2], coarse_ref.shape[3]
    Ho, Wo = o_ref.shape[2], o_ref.shape[3]
    x = coarse_ref[0].astype(jnp.float32)                       # (C, Hc, Wc)
    awt_b = jnp.broadcast_to(awt_ref[...], (C, Wc, Wo))         # f32
    y = lax.dot_general(x, awt_b, (((2,), (1,)), ((0,), (0,))),
                        preferred_element_type=jnp.float32)     # (C, Hc, Wo)
    ah_b = jnp.broadcast_to(ah_ref[...], (C, Ho, Hc))
    up = lax.dot_general(ah_b, y, (((2,), (1,)), ((0,), (0,))),
                         preferred_element_type=jnp.float32)    # (C, Ho, Wo)
    o_ref[0] = (up + lat_ref[0].astype(jnp.float32)).astype(o_ref.dtype)


def _interp_matrix(n_out, n_in):
    """(n_out, n_in) align_corners=True linear interpolation matrix, f32."""
    if n_in == 1:
        return jnp.ones((n_out, 1), jnp.float32)
    pos = jnp.arange(n_out, dtype=jnp.float32) * (n_in - 1) / (n_out - 1)
    lo = jnp.clip(jnp.floor(pos).astype(jnp.int32), 0, n_in - 2)
    frac = pos - lo.astype(jnp.float32)
    eye = jnp.eye(n_in, dtype=jnp.float32)
    return (1.0 - frac)[:, None] * eye[lo] + frac[:, None] * eye[lo + 1]


def upsample2x_add(coarse, lateral):
    N, C, Hc, Wc = coarse.shape
    Nl, Cl, Ho, Wo = lateral.shape
    assert (N, C) == (Nl, Cl) and Ho == 2 * Hc and Wo == 2 * Wc
    ah = _interp_matrix(Ho, Hc)            # (Ho, Hc)
    awt = _interp_matrix(Wo, Wc).T         # (Wc, Wo)
    return pl.pallas_call(
        _upsample_add_kernel,
        out_shape=jax.ShapeDtypeStruct((N, C, Ho, Wo), lateral.dtype),
        grid=(N,),
        in_specs=[
            pl.BlockSpec((1, C, Hc, Wc), lambda n: (n, 0, 0, 0)),
            pl.BlockSpec((1, C, Ho, Wo), lambda n: (n, 0, 0, 0)),
            pl.BlockSpec((Ho, Hc), lambda n: (0, 0)),
            pl.BlockSpec((Wc, Wo), lambda n: (0, 0)),
        ],
        out_specs=pl.BlockSpec((1, C, Ho, Wo), lambda n: (n, 0, 0, 0)),
        compiler_params=pltpu.CompilerParams(
            dimension_semantics=("parallel",),
            vmem_limit_bytes=_vmem_limit_bytes()),
    )(coarse, lateral, ah, awt)


# ----------------------------------------------------------------------------
# Synthetic parameters (Conv + folded BatchNorm; no checkpoint load).
# ----------------------------------------------------------------------------
def _he_conv(key, cout, cin, k, *, with_bias):
    k_w, k_b = jax.random.split(key)
    fan_in = k * k * cin
    w = jax.random.normal(k_w, (cout, cin, k, k), jnp.float32) * (2.0 / fan_in) ** 0.5
    b = (jax.random.normal(k_b, (cout,), jnp.float32) * 0.01
         if with_bias else jnp.zeros((cout,), jnp.float32))
    return w, b


def _conv_bn(key, cout, cin, k):
    # Conv(bias=False) + BatchNorm(default init) folded: scale=1/sqrt(1+eps), shift=0.
    w, _ = _he_conv(key, cout, cin, k, with_bias=False)
    return {"w": w * (1.0 / jnp.sqrt(1.0 + _BN_EPS)),
            "b": jnp.zeros((cout,), jnp.float32)}


def init_network_params(key):
    ks = jax.random.split(key, 13)
    p = {"conv0": [_conv_bn(ks[0], 8, 3, 3), _conv_bn(ks[1], 8, 8, 3)],
         "conv1": [_conv_bn(ks[2], 16, 8, 5), _conv_bn(ks[3], 16, 16, 3),
                   _conv_bn(ks[4], 16, 16, 3)],
         "conv2": [_conv_bn(ks[5], 32, 16, 5), _conv_bn(ks[6], 32, 32, 3),
                   _conv_bn(ks[7], 32, 32, 3)]}
    for name, k, (cout, cin, ksz) in [("toplayer", ks[8], (32, 32, 1)),
                                      ("lat1", ks[9], (32, 16, 1)),
                                      ("lat0", ks[10], (32, 8, 1)),
                                      ("smooth1", ks[11], (16, 32, 3)),
                                      ("smooth0", ks[12], (8, 32, 3))]:
        w, b = _he_conv(k, cout, cin, ksz, with_bias=True)
        p[name] = {"w": w, "b": b}
    return p


_STAGE_CFG = {"conv0": ((1, 1), (1, 1)),
              "conv1": ((2, 2), (1, 1), (1, 1)),
              "conv2": ((2, 2), (1, 1), (1, 1))}


# ----------------------------------------------------------------------------
# FeatureNet / Network forward
# ----------------------------------------------------------------------------
def feature_net_forward(params, x):
    """x: (N, 3, H, W) -> (feat2[H/4,32], feat1[H/2,16], feat0[H,8])."""
    stage_out = {}
    h = x
    for stage in ("conv0", "conv1", "conv2"):
        for layer, (s, p) in zip(params[stage], _STAGE_CFG[stage]):
            h = conv2d_direct(h, layer["w"], layer["b"], stride=s, padding=p,
                              relu=True)
        stage_out[stage] = h
    conv0, conv1, conv2 = stage_out["conv0"], stage_out["conv1"], stage_out["conv2"]

    # Final-level kernels emit f32 directly (no wrapper-side astype round trip).
    feat2 = conv2d_direct(conv2, params["toplayer"]["w"], params["toplayer"]["b"],
                          stride=1, padding=0, relu=False, out_dtype=jnp.float32)
    lat1 = conv2d_direct(conv1, params["lat1"]["w"], params["lat1"]["b"],
                         stride=1, padding=0, relu=False)
    feat1 = upsample2x_add(feat2, lat1)
    lat0 = conv2d_direct(conv0, params["lat0"]["w"], params["lat0"]["b"],
                         stride=1, padding=0, relu=False)
    feat0 = upsample2x_add(feat1, lat0)
    feat1 = conv2d_direct(feat1, params["smooth1"]["w"], params["smooth1"]["b"],
                          stride=1, padding=1, relu=False, out_dtype=jnp.float32)
    feat0 = conv2d_direct(feat0, params["smooth0"]["w"], params["smooth0"]["b"],
                          stride=1, padding=1, relu=False, out_dtype=jnp.float32)
    return feat2, feat1, feat0


@jax.jit
def network_forward(params, batch):
    rgb = batch["rgb"]                                   # (B, S, 3, H, W)
    B, S, C, H, W = rgb.shape
    x = rgb.reshape(B * S, C, H, W).astype(_COMPUTE_DTYPE)
    feat2, feat1, feat0 = feature_net_forward(params, x)
    feats = {"level_2": feat0.reshape(B, S, feat0.shape[1], H, W),
             "level_1": feat1.reshape(B, S, feat1.shape[1], H // 2, W // 2),
             "level_0": feat2.reshape(B, S, feat2.shape[1], H // 4, W // 4)}
    return {"feats": feats}


# ----------------------------------------------------------------------------
# Self-checks of the kernels against XLA references (small shapes).
# ----------------------------------------------------------------------------
def _conv_reference(x, w, b, stride, padding, relu):
    out = lax.conv_general_dilated(
        x, w, window_strides=(stride, stride),
        padding=((padding, padding), (padding, padding)),
        dimension_numbers=("NCHW", "OIHW", "NCHW"),
        precision=lax.Precision.HIGHEST)
    out = out + b[None, :, None, None]
    return jnp.maximum(out, 0.0) if relu else out


def _self_check():
    key = jax.random.PRNGKey(42)
    k1, k2, k3, k4, k5, k6, k7 = jax.random.split(key, 7)

    # stride-1 3x3 conv (taps folded into one matmul)
    x = jax.random.normal(k1, (2, 3, 16, 16), jnp.float32)
    w = jax.random.normal(k2, (8, 3, 3, 3), jnp.float32) * 0.25
    b = jax.random.normal(k3, (8,), jnp.float32) * 0.1
    got = conv2d_direct(x, w, b, stride=1, padding=1, relu=True)
    ref = _conv_reference(x, w, b, 1, 1, True)
    assert got.shape == ref.shape
    assert bool(jnp.allclose(got, ref, rtol=6e-2, atol=6e-2)), "stride-1 conv mismatch"

    # stride-2 5x5 conv (parity-plane split)
    x2 = jax.random.normal(k4, (2, 8, 16, 16), jnp.float32)
    w2 = jax.random.normal(k5, (16, 8, 5, 5), jnp.float32) * 0.1
    b2 = jnp.zeros((16,), jnp.float32)
    got2 = conv2d_direct(x2, w2, b2, stride=2, padding=2, relu=False)
    ref2 = _conv_reference(x2, w2, b2, 2, 2, False)
    assert got2.shape == ref2.shape
    assert bool(jnp.allclose(got2, ref2, rtol=6e-2, atol=6e-2)), "stride-2 conv mismatch"

    # upsample+add (batched dot_general path)
    coarse = jax.random.normal(k6, (2, 32, 4, 4), jnp.float32)
    lat = jax.random.normal(k7, (2, 32, 8, 8), jnp.float32)
    got3 = upsample2x_add(coarse, lat)
    ah = _interp_matrix(8, 4)
    awt = _interp_matrix(8, 4).T
    ref3 = jnp.einsum("Hh,nchw,wW->ncHW", ah, coarse, awt,
                      precision=lax.Precision.HIGHEST) + lat
    assert bool(jnp.allclose(got3, ref3, rtol=2e-2, atol=2e-2)), "upsample mismatch"


if __name__ == "__main__":
    _self_check()

    key = jax.random.PRNGKey(0)
    k_param, k_data = jax.random.split(key)
    params = init_network_params(k_param)

    B, S, H, W = 2, 2, 16, 16
    batch = {"rgb": jax.random.normal(k_data, (B, S, 3, H, W), jnp.float32)}

    ret = network_forward(params, batch)
    jax.block_until_ready(ret)

    feats = ret["feats"]
    assert feats["level_2"].shape == (B, S, 8, H, W)
    assert feats["level_1"].shape == (B, S, 16, H // 2, W // 2)
    assert feats["level_0"].shape == (B, S, 32, H // 4, W // 4)
    assert all(bool(jnp.isfinite(v).all()) for v in feats.values())
    print("KERNEL_OK")
</pallas_src>

<mosaic_0001>
module attributes {stable_mosaic.version = 11 : i64} {
  func.func @_conv_stacked_kernel(%arg0: i32, %arg1: memref<1x8x342xf32, #tpu.memory_space<vmem>>, %arg2: memref<8x72xf32, #tpu.memory_space<vmem>>, %arg3: memref<8x1xf32, #tpu.memory_space<vmem>>, %arg4: memref<1x8x288xf32, #tpu.memory_space<vmem>>) attributes {dimension_semantics = [#tpu.dimension_semantics<parallel>], iteration_bounds = array<i64: 2>, scalar_prefetch = 0 : i64, scratch_operands = 0 : i64, tpu.core_type = #tpu.core_type<tc>, window_params = [{transform_indices = @transform_0, window_bounds = array<i64: 1, 8, 342>}, {pipeline_mode = #tpu.pipeline_mode<synchronous>, transform_indices = @transform_1, window_bounds = array<i64: 8, 72>}, {pipeline_mode = #tpu.pipeline_mode<synchronous>, transform_indices = @transform_2, window_bounds = array<i64: 8, 1>}, {transform_indices = @transform_3, window_bounds = array<i64: 1, 8, 288>}]} {
    %c0 = arith.constant 0 : index
    %c0_0 = arith.constant 0 : index
    %0 = vector.load %arg2[%c0, %c0_0] : memref<8x72xf32, #tpu.memory_space<vmem>>, vector<8x72xf32>
    %c0_1 = arith.constant 0 : index
    %c0_2 = arith.constant 0 : index
    %1 = vector.load %arg3[%c0_1, %c0_2] : memref<8x1xf32, #tpu.memory_space<vmem>>, vector<8x1xf32>
    %c0_3 = arith.constant 0 : index
    %c0_4 = arith.constant 0 : index
    %c0_5 = arith.constant 0 : index
    %2 = vector.load %arg1[%c0_3, %c0_4, %c0_5] : memref<1x8x342xf32, #tpu.memory_space<vmem>>, vector<1x8x288xf32>
    %3 = vector.shape_cast %2 : vector<1x8x288xf32> to vector<8x288xf32>
    %c0_6 = arith.constant 0 : index
    %c0_7 = arith.constant 0 : index
    %c1 = arith.constant 1 : index
    %4 = vector.load %arg1[%c0_6, %c0_7, %c1] : memref<1x8x342xf32, #tpu.memory_space<vmem>>, vector<1x8x288xf32>
    %5 = vector.shape_cast %4 : vector<1x8x288xf32> to vector<8x288xf32>
    %c0_8 = arith.constant 0 : index
    %c0_9 = arith.constant 0 : index
    %c2 = arith.constant 2 : index
    %6 = vector.load %arg1[%c0_8, %c0_9, %c2] : memref<1x8x342xf32, #tpu.memory_space<vmem>>, vector<1x8x288xf32>
    %7 = vector.shape_cast %6 : vector<1x8x288xf32> to vector<8x288xf32>
    %c0_10 = arith.constant 0 : index
    %c0_11 = arith.constant 0 : index
    %c18 = arith.constant 18 : index
    %8 = vector.load %arg1[%c0_10, %c0_11, %c18] : memref<1x8x342xf32, #tpu.memory_space<vmem>>, vector<1x8x288xf32>
    %9 = vector.shape_cast %8 : vector<1x8x288xf32> to vector<8x288xf32>
    %c0_12 = arith.constant 0 : index
    %c0_13 = arith.constant 0 : index
    %c19 = arith.constant 19 : index
    %10 = vector.load %arg1[%c0_12, %c0_13, %c19] : memref<1x8x342xf32, #tpu.memory_space<vmem>>, vector<1x8x288xf32>
    %11 = vector.shape_cast %10 : vector<1x8x288xf32> to vector<8x288xf32>
    %c0_14 = arith.constant 0 : index
    %c0_15 = arith.constant 0 : index
    %c20 = arith.constant 20 : index
    %12 = vector.load %arg1[%c0_14, %c0_15, %c20] : memref<1x8x342xf32, #tpu.memory_space<vmem>>, vector<1x8x288xf32>
    %13 = vector.shape_cast %12 : vector<1x8x288xf32> to vector<8x288xf32>
    %c0_16 = arith.constant 0 : index
    %c0_17 = arith.constant 0 : index
    %c36 = arith.constant 36 : index
    %14 = vector.load %arg1[%c0_16, %c0_17, %c36] : memref<1x8x342xf32, #tpu.memory_space<vmem>>, vector<1x8x288xf32>
    %15 = vector.shape_cast %14 : vector<1x8x288xf32> to vector<8x288xf32>
    %c0_18 = arith.constant 0 : index
    %c0_19 = arith.constant 0 : index
    %c37 = arith.constant 37 : index
    %16 = vector.load %arg1[%c0_18, %c0_19, %c37] : memref<1x8x342xf32, #tpu.memory_space<vmem>>, vector<1x8x288xf32>
    %17 = vector.shape_cast %16 : vector<1x8x288xf32> to vector<8x288xf32>
    %c0_20 = arith.constant 0 : index
    %c0_21 = arith.constant 0 : index
    %c38 = arith.constant 38 : index
    %18 = vector.load %arg1[%c0_20, %c0_21, %c38] : memref<1x8x342xf32, #tpu.memory_space<vmem>>, vector<1x8x288xf32>
    %19 = vector.shape_cast %18 : vector<1x8x288xf32> to vector<8x288xf32>
    %20 = tpu.concatenate %3, %5, %7, %9, %11, %13, %15, %17, %19 in 0 : vector<8x288xf32>, vector<8x288xf32>, vector<8x288xf32>, vector<8x288xf32>, vector<8x288xf32>, vector<8x288xf32>, vector<8x288xf32>, vector<8x288xf32>, vector<8x288xf32> -> vector<72x288xf32>
    %cst = arith.constant dense<0.000000e+00> : vector<8x288xf32>
    %21 = tpu.matmul %0, %20, %cst {dimension_numbers = #tpu.dot_dimension_numbers<[1], [0], [0], [1], [0, 0, 1, 1], [], []>} : vector<8x72xf32>, vector<72x288xf32>, vector<8x288xf32> -> vector<8x288xf32>
    %22 = vector.broadcast %1 : vector<8x1xf32> to vector<8x288xf32>
    %23 = arith.addf %21, %22 : vector<8x288xf32>
    %cst_22 = arith.constant 0.000000e+00 : f32
    %24 = vector.broadcast %cst_22 : f32 to vector<8x288xf32>
    %25 = arith.maximumf %23, %24 : vector<8x288xf32>
    %c0_23 = arith.constant 0 : index
    %c0_24 = arith.constant 0 : index
    %c0_25 = arith.constant 0 : index
    %26 = vector.load %arg4[%c0_23, %c0_24, %c0_25] : memref<1x8x288xf32, #tpu.memory_space<vmem>>, vector<1x8x288xf32>
    %27 = vector.shape_cast %26 : vector<1x8x288xf32> to vector<8x288xf32>
    %28 = vector.shape_cast %25 : vector<8x288xf32> to vector<1x8x288xf32>
    tpu.vector_store %arg4[%c0_23, %c0_24, %c0_25], %28 {strides = array<i32>} : memref<1x8x288xf32, #tpu.memory_space<vmem>>, vector<1x8x288xf32>,
    return
  }
  func.func @transform_0(%arg0: i32) -> (i32, i32, i32) {
    %c0_i32 = arith.constant 0 : i32
    %c0_i32_0 = arith.constant 0 : i32
    %c0_i32_1 = arith.constant 0 : i32
    return %arg0, %c0_i32, %c0_i32_0 : i32, i32, i32
  }
  func.func @transform_1(%arg0: i32) -> (i32, i32) {
    %c0_i32 = arith.constant 0 : i32
    %c0_i32_0 = arith.constant 0 : i32
    %c0_i32_1 = arith.constant 0 : i32
    return %c0_i32, %c0_i32_0 : i32, i32
  }
  func.func @transform_2(%arg0: i32) -> (i32, i32) {
    %c0_i32 = arith.constant 0 : i32
    %c0_i32_0 = arith.constant 0 : i32
    %c0_i32_1 = arith.constant 0 : i32
    return %c0_i32, %c0_i32_0 : i32, i32
  }
  func.func @transform_3(%arg0: i32) -> (i32, i32, i32) {
    %c0_i32 = arith.constant 0 : i32
    %c0_i32_0 = arith.constant 0 : i32
    %c0_i32_1 = arith.constant 0 : i32
    return %arg0, %c0_i32, %c0_i32_0 : i32, i32, i32
  }
}

</mosaic_0001>

<llo_original>
// kernel: tpu_custom_call.1
$region0: #{tpu_custom_call.1}
  #allocation0 [shape = 'u32[]', space=smem, size = 0x4, offset = 0x4, fixed_abs, tag = 'smem constant byte address 0x4 - core index']
  #allocation1 [shape = 'u32[144,128]{1,0:T(1,128)}', space=vmem, size = 0x12000, scoped, tag = 'internal scratch']
  %s0 = inlined_call_operand.hbm [shape: f32[2,8,342], index: 0, kind: input, shape index: {}]
  %s1 = inlined_call_operand.vmem [shape: f32[8,72], index: 1, kind: input, shape index: {}]
  %s2 = inlined_call_operand.vmem [shape: f32[8,1], index: 2, kind: input, shape index: {}]
  %s3 = inlined_call_operand.hbm [shape: f32[2,8,288], index: 3, kind: output, shape index: {}]
  %s4 = sld [smem:[#allocation0]]
  $region49: #{tpu_custom_call.1} parent=0
    _
  %s6 = ssub.s32 1, %s4
  %s7 = scalar_select 0, %s6, %s4
  $region1: #{tpu_custom_call.1} parent=0
    #allocation2 [shape = 'u8[24576]{0}', space=vmem, size = 0x6000, scoped, tag = 'input window, operand 0']
    #allocation3 [shape = 's32[2]{0}', space=sflag, size = 0x8, scoped, tag = 'scoped memory for tpu_custom_call.1']
    #allocation4 [shape = 's32[2]{0}', space=sflag, size = 0x8, scoped, tag = 'scoped memory for tpu_custom_call.1']
    #allocation5 [shape = 'u8[24576]{0}', space=vmem, size = 0x6000, scoped, tag = 'output window, operand 0']
    %8 = vsyncpa [#allocation3], 0
    %s9 = scalar_lea.sflag [#allocation3], 1
    %10 = vsyncpa %s9, 0
    %11 = vsyncpa [#allocation4], 0
    %s12 = scalar_lea.sflag [#allocation4], 1
    %13 = vsyncpa %s12, 0
    loop: start=0, step=1, limit=4
    $region2: #{tpu_custom_call.1} parent=1 // loop_pre_header
      _
    $region3: #{tpu_custom_call.1} parent=1 // loop_header
      %s15 = sphi 0, %s19
      %p16 = scmp.ge.s32.totalorder %s15, 4
      %s25 = sphi 0, %s27
      %s28 = sphi 0, %s25
      %s29 = sphi 0, %s28
      %s45 = sphi 0, %s29
      %s49 = sphi 0, %s49
      %s51 = sphi 0, %s49
      %s52 = sphi 0, %s51
      %s66 = sphi 0, %s52
      %s70 = sphi 0, %s70
      %s72 = sphi 0, %s70
      %s73 = sphi 0, %s72
      %s87 = sphi 0, %s73
      %s93 = sphi 0, %s95
      %s96 = sphi 0, %s93
      %s97 = sphi 0, %s96
      %s113 = sphi 0, %s97
    $region4: #{tpu_custom_call.1} parent=1 // loop_header_branch
      %18 = sbr.rel (%p16) target = $region8
    $region5: #{tpu_custom_call.1} parent=1 // loop_body
      %s20 = ssub.s32 %s15, 1
      %s21 = ssub.s32 %s15, 2
      %s22 = sadd.s32 %s15, 1
      %s23 = ssub.s32 %s15, %s22
      %p24 = scmp.eq.s32.totalorder %s23, 0
      %s26 = sadd.s32 %s25, 1
      %s27 = scalar_select %p24, %s25, %s26
      %p30 = pneg %p24
      %p31 = scmp.eq.s32.totalorder %s15, 1
      %p32 = por %p30, %p31
      %p33 = scmp.ne.s32.totalorder %s25, %s28
      %p34 = scmp.eq.s32.totalorder %s15, 0
      %p35 = por %p33, %p34
      %p36 = scmp.ne.s32.totalorder %s25, %s28
      %p37 = scmp.eq.s32.totalorder %s20, 1
      %p38 = por %p36, %p37
      %p39 = scmp.ne.s32.totalorder %s28, %s29
      %p40 = scmp.eq.s32.totalorder %s20, 0
      %p41 = por %p39, %p40
      %p42 = scmp.ne.s32.totalorder %s28, %s29
      %p43 = scmp.eq.s32.totalorder %s21, 1
      %p44 = por %p42, %p43
      %p46 = scmp.ne.s32.totalorder %s29, %s45
      %p47 = scmp.eq.s32.totalorder %s21, 0
      %p48 = por %p46, %p47
      %s50 = sadd.s32 %s49, 1
      %p53 = scmp.eq.s32.totalorder %s15, 1
      %p54 = scmp.ne.s32.totalorder %s49, %s51
      %p55 = scmp.eq.s32.totalorder %s15, 0
      %p56 = por %p54, %p55
      %p57 = scmp.ne.s32.totalorder %s49, %s51
      %p58 = scmp.eq.s32.totalorder %s20, 1
      %p59 = por %p57, %p58
      %p60 = scmp.ne.s32.totalorder %s51, %s52
      %p61 = scmp.eq.s32.totalorder %s20, 0
      %p62 = por %p60, %p61
      %p63 = scmp.ne.s32.totalorder %s51, %s52
      %p64 = scmp.eq.s32.totalorder %s21, 1
      %p65 = por %p63, %p64
      %p67 = scmp.ne.s32.totalorder %s52, %s66
      %p68 = scmp.eq.s32.totalorder %s21, 0
      %p69 = por %p67, %p68
      %s71 = sadd.s32 %s70, 1
      %p74 = scmp.eq.s32.totalorder %s15, 1
      %p75 = scmp.ne.s32.totalorder %s70, %s72
      %p76 = scmp.eq.s32.totalorder %s15, 0
      %p77 = por %p75, %p76
      %p78 = scmp.ne.s32.totalorder %s70, %s72
      %p79 = scmp.eq.s32.totalorder %s20, 1
      %p80 = por %p78, %p79
      %p81 = scmp.ne.s32.totalorder %s72, %s73
      %p82 = scmp.eq.s32.totalorder %s20, 0
      %p83 = por %p81, %p82
      %p84 = scmp.ne.s32.totalorder %s72, %s73
      %p85 = scmp.eq.s32.totalorder %s21, 1
      %p86 = por %p84, %p85
      %p88 = scmp.ne.s32.totalorder %s73, %s87
      %p89 = scmp.eq.s32.totalorder %s21, 0
      %p90 = por %p88, %p89
      %s91 = ssub.s32 %s15, %s22
      %p92 = scmp.eq.s32.totalorder %s91, 0
      %s94 = sadd.s32 %s93, 1
      %s95 = scalar_select %p92, %s93, %s94
      %p98 = pneg %p92
      %p99 = scmp.eq.s32.totalorder %s15, 1
      %p100 = por %p98, %p99
      %p101 = scmp.ne.s32.totalorder %s93, %s96
      %p102 = scmp.eq.s32.totalorder %s15, 0
      %p103 = por %p101, %p102
      %p104 = scmp.ne.s32.totalorder %s93, %s96
      %p105 = scmp.eq.s32.totalorder %s20, 1
      %p106 = por %p104, %p105
      %p107 = scmp.ne.s32.totalorder %s96, %s97
      %p108 = scmp.eq.s32.totalorder %s20, 0
      %p109 = por %p107, %p108
      %p110 = scmp.ne.s32.totalorder %s96, %s97
      %p111 = scmp.eq.s32.totalorder %s21, 1
      %p112 = por %p110, %p111
      %p114 = scmp.ne.s32.totalorder %s97, %s113
      %p115 = scmp.eq.s32.totalorder %s21, 0
      %p116 = por %p114, %p115
      %p117 = scmp.le.s32.totalorder 1, %s15
      %p118 = scmp.lt.s32.totalorder %s15, 3
      %p119 = pnand %p117, %p118
      %p120 = pneg %p119
      // Predicated region
      $region9: #{tpu_custom_call.1} parent=5 // pred_check
        _
      $region10: #{tpu_custom_call.1} parent=5 // pred_check_branch
        %122 = sbr.rel (%p119) target = $region12
      $region11: #{tpu_custom_call.1} parent=5 // pred_region
        %s123 = ssub.s32 %s15, 1
        // Predicated region
        $region13: #{tpu_custom_call.1} parent=11 // pred_check
          %p124 = pneg %p62
        $region14: #{tpu_custom_call.1} parent=11 // pred_check_branch
          %126 = sbr.rel (%p124) target = $region16
        $region15: #{tpu_custom_call.1} parent=11 // pred_region
          _
        $region16: #{tpu_custom_call.1} parent=11 // pred_fallthru
          _
        // Predicated region
        $region17: #{tpu_custom_call.1} parent=11 // pred_check
          %p127 = pneg %p83
        $region18: #{tpu_custom_call.1} parent=11 // pred_check_branch
          %129 = sbr.rel (%p127) target = $region20
        $region19: #{tpu_custom_call.1} parent=11 // pred_region
          _
        $region20: #{tpu_custom_call.1} parent=11 // pred_fallthru
          _
      $region12: #{tpu_custom_call.1} parent=5 // pred_fallthru
        _
      %p130 = scmp.lt.s32.totalorder %s15, 2
      // Predicated region
      $region21: #{tpu_custom_call.1} parent=5 // pred_check
        %p131 = pneg %p130
      $region22: #{tpu_custom_call.1} parent=5 // pred_check_branch
        %133 = sbr.rel (%p131) target = $region24
      $region23: #{tpu_custom_call.1} parent=5 // pred_region
        // Predicated region
        $region25: #{tpu_custom_call.1} parent=23 // pred_check
          %p134 = pneg %p35
        $region26: #{tpu_custom_call.1} parent=23 // pred_check_branch
          %136 = sbr.rel (%p134) target = $region28
        $region27: #{tpu_custom_call.1} parent=23 // pred_region
          %s137 = sand.u32 %s25, 1
          %s138 = scalar_lea.sflag [#allocation3], %s137
          %s139 = sand.u32 %s25, 1
          %s140 = smul.addr %s139, 24
          %s141 = scalar_lea.vmem [#allocation2], %s140
          %s143 = ssub.s32 384, 384
          %144 = vsyncadd %s138, %s143
          %s145 = smul.addr %s15, 3
          %s146 = smul.addr %s145, 128
          %s147 = scalar_lea.hbm %s0, %s146
          %s149 = sshll.u32 %s141, 4
          %s150 = int_to_ptr.vmem [resolvable:$true] %s149
          %152 = dma.hbm_to_vmem [thread:$0]  %s147, 384, %s150, %s138
        $region28: #{tpu_custom_call.1} parent=23 // pred_fallthru
          _
      $region24: #{tpu_custom_call.1} parent=5 // pred_fallthru
        _
      %p153 = scmp.le.s32.totalorder 1, %s15
      %p154 = scmp.lt.s32.totalorder %s15, 3
      %p155 = pnand %p153, %p154
      %p156 = pneg %p155
      // Predicated region
      $region29: #{tpu_custom_call.1} parent=5 // pred_check
        _
      $region30: #{tpu_custom_call.1} parent=5 // pred_check_branch
        %158 = sbr.rel (%p155) target = $region32
      $region31: #{tpu_custom_call.1} parent=5 // pred_region
        %s159 = ssub.s32 %s15, 1
        %s160 = sand.u32 %s28, 1
        %s161 = scalar_lea.sflag [#allocation3], %s160
        %s162 = sand.u32 %s28, 1
        %s163 = smul.addr %s162, 24
        %s164 = scalar_lea.vmem [#allocation2], %s163
        // Predicated region
        $region33: #{tpu_custom_call.1} parent=31 // pred_check
          %p165 = pneg %p41
        $region34: #{tpu_custom_call.1} parent=31 // pred_check_branch
          %167 = sbr.rel (%p165) target = $region36
        $region35: #{tpu_custom_call.1} parent=31 // pred_region
          %168 = dma.done %s161, 384
        $region36: #{tpu_custom_call.1} parent=31 // pred_fallthru
          _
        %s169 = sand.u32 %s28, 1
        %s170 = scalar_lea.sflag [#allocation3], %s169
        %s171 = sand.u32 %s28, 1
        %s172 = smul.addr %s171, 24
        %s173 = scalar_lea.vmem [#allocation2], %s172
        %p174 = pneg %p41
        %p175 = pneg %p38
        %p176 = pneg %p62
        %p177 = pneg %p59
        %p178 = pneg %p83
        %p179 = pneg %p80
        %p180 = pneg %p109
        %p181 = pneg %p106
        %s182 = sand.u32 %s96, 1
        %s183 = scalar_lea.sflag [#allocation4], %s182
        %s184 = sand.u32 %s96, 1
        %s185 = smul.addr %s184, 24
        %s186 = scalar_lea.vmem [#allocation5], %s185
        %v187 = vld [vmem:[%s1] sm:$0xff]
        %v188 = vld [vmem:[%s2] sm:$0xff]
        %v189 = vld [vmem:[%s164] sm:$0xff]
        %v190 = vld [vmem:[%s164 + $0x8] sm:$0xff]
        %v191 = vld [vmem:[%s164 + $0x10] sm:$0xff]
        %195 = vrot.lane.b32.xlu0 %v189, 127
        %v196 = vpop.permute.xlu0 %195
        %197 = vrot.lane.b32.xlu0 %v190, 127
        %v198 = vpop.permute.xlu0 %197
        %199 = vrot.lane.b32.xlu0 %v191, 127
        %v200 = vpop.permute.xlu0 %199
        %vm201 = vcmask 1039360
        %v202 = vsel %vm201, %v196, %v198
        %v203 = vsel %vm201, %v198, %v200
        %207 = vrot.lane.b32.xlu0 %v189, 126
        %v208 = vpop.permute.xlu0 %207
        %209 = vrot.lane.b32.xlu0 %v190, 126
        %v210 = vpop.permute.xlu0 %209
        %211 = vrot.lane.b32.xlu0 %v191, 126
        %v212 = vpop.permute.xlu0 %211
        %vm213 = vcmask 1031168
        %v214 = vsel %vm213, %v208, %v210
        %v215 = vsel %vm213, %v210, %v212
        %219 = vrot.lane.b32.xlu0 %v189, 110
        %v220 = vpop.permute.xlu0 %219
        %221 = vrot.lane.b32.xlu0 %v190, 110
        %v222 = vpop.permute.xlu0 %221
        %223 = vrot.lane.b32.xlu0 %v191, 110
        %v224 = vpop.permute.xlu0 %223
        %vm225 = vcmask 900096
        %v226 = vsel %vm225, %v220, %v222
        %v227 = vsel %vm225, %v222, %v224
        %231 = vrot.lane.b32.xlu0 %v189, 109
        %v232 = vpop.permute.xlu0 %231
        %233 = vrot.lane.b32.xlu0 %v190, 109
        %v234 = vpop.permute.xlu0 %233
        %235 = vrot.lane.b32.xlu0 %v191, 109
        %v236 = vpop.permute.xlu0 %235
        %vm237 = vcmask 891904
        %v238 = vsel %vm237, %v232, %v234
        %v239 = vsel %vm237, %v234, %v236
        %243 = vrot.lane.b32.xlu0 %v189, 108
        %v244 = vpop.permute.xlu0 %243
        %245 = vrot.lane.b32.xlu0 %v190, 108
        %v246 = vpop.permute.xlu0 %245
        %247 = vrot.lane.b32.xlu0 %v191, 108
        %v248 = vpop.permute.xlu0 %247
        %vm249 = vcmask 883712
        %v250 = vsel %vm249, %v244, %v246
        %v251 = vsel %vm249, %v246, %v248
        %255 = vrot.lane.b32.xlu0 %v189, 92
        %v256 = vpop.permute.xlu0 %255
        %257 = vrot.lane.b32.xlu0 %v190, 92
        %v258 = vpop.permute.xlu0 %257
        %259 = vrot.lane.b32.xlu0 %v191, 92
        %v260 = vpop.permute.xlu0 %259
        %vm261 = vcmask 752640
        %v262 = vsel %vm261, %v256, %v258
        %v263 = vsel %vm261, %v258, %v260
        %267 = vrot.lane.b32.xlu0 %v189, 91
        %v268 = vpop.permute.xlu0 %267
        %269 = vrot.lane.b32.xlu0 %v190, 91
        %v270 = vpop.permute.xlu0 %269
        %271 = vrot.lane.b32.xlu0 %v191, 91
        %v272 = vpop.permute.xlu0 %271
        %vm273 = vcmask 744448
        %v274 = vsel %vm273, %v268, %v270
        %v275 = vsel %vm273, %v270, %v272
        %279 = vrot.lane.b32.xlu0 %v189, 90
        %v280 = vpop.permute.xlu0 %279
        %281 = vrot.lane.b32.xlu0 %v190, 90
        %v282 = vpop.permute.xlu0 %281
        %283 = vrot.lane.b32.xlu0 %v191, 90
        %v284 = vpop.permute.xlu0 %283
        %vm285 = vcmask 736256
        %v286 = vsel %vm285, %v280, %v282
        %v287 = vsel %vm285, %v282, %v284
        %292 = vset.pattern.permute.xlu0 0
        %293 = vperm.xlu0 %292, %v188
        %v294 = vpop.permute.xlu0 %293
        %vm296 = vcmask 588800
        %v298 = vsel %vm296, %v187, 0
        %300 = vmatprep.subr.mxu0 0.0
        %301 = vmatpush1.msra.mxu0 0.0
        %302 = vmatprep.subr.mxu0 0.0
        %303 = vmatpush1.msra.mxu0 0.0
        %304 = vmatprep.subr.mxu0 0.0
        %305 = vmatpush1.msra.mxu0 0.0
        %306 = vmatprep.subr.mxu0 0.0
        %307 = vmatpush1.msra.mxu0 0.0
        %308 = vmatprep.subr.mxu0 0.0
        %309 = vmatpush1.msra.mxu0 0.0
        %310 = vmatprep.subr.mxu0 0.0
        %311 = vmatpush1.msra.mxu0 0.0
        %312 = vmatprep.subr.mxu0 0.0
        %313 = vmatpush1.msra.mxu0 0.0
        %314 = vmatprep.subr.mxu0 %v287
        %315 = vmatpush1.msra.mxu0 %v286
        %316 = vmatprep.subr.mxu0 %v275
        %317 = vmatpush1.msra.mxu0 %v274
        %318 = vmatprep.subr.mxu0 %v263
        %319 = vmatpush1.msra.mxu0 %v262
        %320 = vmatprep.subr.mxu0 %v251
        %321 = vmatpush1.msra.mxu0 %v250
        %322 = vmatprep.subr.mxu0 %v239
        %323 = vmatpush1.msra.mxu0 %v238
        %324 = vmatprep.subr.mxu0 %v227
        %325 = vmatpush1.msra.mxu0 %v226
        %326 = vmatprep.subr.mxu0 %v215
        %327 = vmatpush1.msra.mxu0 %v214
        %328 = vmatprep.subr.mxu0 %v203
        %329 = vmatpush1.msra.mxu0 %v202
        %330 = vmatprep.subr.mxu0 %v190
        %331 = vmatpush1.msra.mxu0 %v189
        %332 = vmatprep.subr.mxu0 0.0
        %333 = vmatpush2.msra.mxu0 0.0
        %334 = vmatprep.subr.mxu0 0.0
        %335 = vmatpush2.msra.mxu0 0.0
        %336 = vmatprep.subr.mxu0 0.0
        %337 = vmatpush2.msra.mxu0 0.0
        %338 = vmatprep.subr.mxu0 0.0
        %339 = vmatpush2.msra.mxu0 0.0
        %340 = vmatprep.subr.mxu0 0.0
        %341 = vmatpush2.msra.mxu0 0.0
        %342 = vmatprep.subr.mxu0 0.0
        %343 = vmatpush2.msra.mxu0 0.0
        %344 = vmatprep.subr.mxu0 0.0
        %345 = vmatpush2.msra.mxu0 0.0
        %346 = vmatprep.subr.mxu0 0.0
        %347 = vmatpush2.msra.mxu0 0.0
        %348 = vmatprep.subr.mxu0 0.0
        %349 = vmatpush2.msra.mxu0 0.0
        %350 = vmatprep.subr.mxu0 0.0
        %351 = vmatpush2.msra.mxu0 0.0
        %352 = vmatprep.subr.mxu0 0.0
        %353 = vmatpush2.msra.mxu0 0.0
        %354 = vmatprep.subr.mxu0 0.0
        %355 = vmatpush2.msra.mxu0 0.0
        %356 = vmatprep.subr.mxu0 0.0
        %357 = vmatpush2.msra.mxu0 0.0
        %358 = vmatprep.subr.mxu0 0.0
        %359 = vmatpush2.msra.mxu0 0.0
        %360 = vmatprep.subr.mxu0 0.0
        %361 = vmatpush2.msra.mxu0 0.0
        %362 = vmatprep.subr.mxu0 0.0
        %363 = vmatpush2.msra.mxu0 0.0
        %364 = vmatprep.mubr.f32.mxu0 0.0
        %365 = vmatmul.mubr.f32.gmra.mxu0 %v298
        %v366 = vpop.f32.mrf.mxu0
        %v367 = vadd.f32 %v294, %v366
        %v368 = vpop.f32.mrf.mxu0
        %v369 = vadd.f32 %v294, %v368
        %370 = vdwg.mxu0
        %371 = vmatprep.subr.mxu0 0.0
        %372 = vmatpush1.msra.mxu0 0.0
        %373 = vmatprep.subr.mxu0 0.0
        %374 = vmatpush1.msra.mxu0 0.0
        %375 = vmatprep.subr.mxu0 0.0
        %376 = vmatpush1.msra.mxu0 0.0
        %377 = vmatprep.subr.mxu0 0.0
        %378 = vmatpush1.msra.mxu0 0.0
        %379 = vmatprep.subr.mxu0 0.0
        %380 = vmatpush1.msra.mxu0 0.0
        %381 = vmatprep.subr.mxu0 0.0
        %382 = vmatpush1.msra.mxu0 0.0
        %383 = vmatprep.subr.mxu0 0.0
        %384 = vmatpush1.msra.mxu0 0.0
        %385 = vmatprep.subr.mxu0 0.0
        %386 = vmatpush1.msra.mxu0 %v284
        %387 = vmatprep.subr.mxu0 0.0
        %388 = vmatpush1.msra.mxu0 %v272
        %389 = vmatprep.subr.mxu0 0.0
        %390 = vmatpush1.msra.mxu0 %v260
        %391 = vmatprep.subr.mxu0 0.0
        %392 = vmatpush1.msra.mxu0 %v248
        %393 = vmatprep.subr.mxu0 0.0
        %394 = vmatpush1.msra.mxu0 %v236
        %395 = vmatprep.subr.mxu0 0.0
        %396 = vmatpush1.msra.mxu0 %v224
        %397 = vmatprep.subr.mxu0 0.0
        %398 = vmatpush1.msra.mxu0 %v212
        %399 = vmatprep.subr.mxu0 0.0
        %400 = vmatpush1.msra.mxu0 %v200
        %401 = vmatprep.subr.mxu0 0.0
        %402 = vmatpush1.msra.mxu0 %v191
        %403 = vmatprep.subr.mxu0 0.0
        %404 = vmatpush2.msra.mxu0 0.0
        %405 = vmatprep.subr.mxu0 0.0
        %406 = vmatpush2.msra.mxu0 0.0
        %407 = vmatprep.subr.mxu0 0.0
        %408 = vmatpush2.msra.mxu0 0.0
        %409 = vmatprep.subr.mxu0 0.0
        %410 = vmatpush2.msra.mxu0 0.0
        %411 = vmatprep.subr.mxu0 0.0
        %412 = vmatpush2.msra.mxu0 0.0
        %413 = vmatprep.subr.mxu0 0.0
        %414 = vmatpush2.msra.mxu0 0.0
        %415 = vmatprep.subr.mxu0 0.0
        %416 = vmatpush2.msra.mxu0 0.0
        %417 = vmatprep.subr.mxu0 0.0
        %418 = vmatpush2.msra.mxu0 0.0
        %419 = vmatprep.subr.mxu0 0.0
        %420 = vmatpush2.msra.mxu0 0.0
        %421 = vmatprep.subr.mxu0 0.0
        %422 = vmatpush2.msra.mxu0 0.0
        %423 = vmatprep.subr.mxu0 0.0
        %424 = vmatpush2.msra.mxu0 0.0
        %425 = vmatprep.subr.mxu0 0.0
        %426 = vmatpush2.msra.mxu0 0.0
        %427 = vmatprep.subr.mxu0 0.0
        %428 = vmatpush2.msra.mxu0 0.0
        %429 = vmatprep.subr.mxu0 0.0
        %430 = vmatpush2.msra.mxu0 0.0
        %431 = vmatprep.subr.mxu0 0.0
        %432 = vmatpush2.msra.mxu0 0.0
        %433 = vmatprep.subr.mxu0 0.0
        %434 = vmatpush2.msra.mxu0 0.0
        %435 = vmatprep.mubr.f32.mxu0 0.0
        %436 = vmatmul.mubr.f32.gmra.mxu0 %v298
        %v437 = vpop.f32.mrf.mxu0
        %v438 = vadd.f32 %v294, %v437
        %v439 = vpop.f32.mrf.mxu0
        %440 = vdwg.mxu0
        %v441 = vmax.f32 %v367, 0.0
        %v442 = vmax.f32 %v369, 0.0
        %v443 = vmax.f32 %v438, 0.0
        %444 = vst [vmem:[%s186] sm:$0xff] %v441
        %445 = vst [vmem:[%s186 + $0x8] sm:$0xff] %v442
        %vm446 = vcmask 261120
        %447 = vst.msk [vmem:[%s186 + $0x10] sm:$0xff] %vm446, %v443
        %s448 = sand.u32 %s96, 1
        %s449 = scalar_lea.sflag [#allocation4], %s448
        %s450 = sand.u32 %s96, 1
        %s451 = smul.addr %s450, 24
        %s452 = scalar_lea.vmem [#allocation5], %s451
        // Predicated region
        $region37: #{tpu_custom_call.1} parent=31 // pred_check
          %p453 = pneg %p106
        $region38: #{tpu_custom_call.1} parent=31 // pred_check_branch
          %455 = sbr.rel (%p453) target = $region40
        $region39: #{tpu_custom_call.1} parent=31 // pred_region
          %s457 = ssub.s32 384, 384
          %458 = vsyncadd %s449, %s457
          %s459 = smul.addr %s20, 3
          %s460 = smul.addr %s459, 128
          %s461 = scalar_lea.hbm %s3, %s460
          %s463 = sshll.u32 %s452, 4
          %s464 = int_to_ptr.vmem [resolvable:$true] %s463
          %466 = dma.vmem_to_hbm [thread:$0]  %s464, 384, %s461, %s449
        $region40: #{tpu_custom_call.1} parent=31 // pred_fallthru
          _
      $region32: #{tpu_custom_call.1} parent=5 // pred_fallthru
        _
      %p467 = scmp.le.s32.totalorder 2, %s15
      // Predicated region
      $region41: #{tpu_custom_call.1} parent=5 // pred_check
        %p468 = pneg %p467
      $region42: #{tpu_custom_call.1} parent=5 // pred_check_branch
        %470 = sbr.rel (%p468) target = $region44
      $region43: #{tpu_custom_call.1} parent=5 // pred_region
        %s471 = ssub.s32 %s15, 2
        // Predicated region
        $region45: #{tpu_custom_call.1} parent=43 // pred_check
          %p472 = pneg %p112
        $region46: #{tpu_custom_call.1} parent=43 // pred_check_branch
          %474 = sbr.rel (%p472) target = $region48
        $region47: #{tpu_custom_call.1} parent=43 // pred_region
          %s475 = sand.u32 %s97, 1
          %s476 = scalar_lea.sflag [#allocation4], %s475
          %s477 = sand.u32 %s97, 1
          %s478 = smul.addr %s477, 24
          %s479 = scalar_lea.vmem [#allocation5], %s478
          %480 = dma.done %s476, 384
        $region48: #{tpu_custom_call.1} parent=43 // pred_fallthru
          _
      $region44: #{tpu_custom_call.1} parent=5 // pred_fallthru
        _
    $region6: #{tpu_custom_call.1} parent=1 // loop_footer
      %s19 = sadd.s32 1, %s15
    $region7: #{tpu_custom_call.1} parent=1 // loop_footer_branch
      %14 = sbr.rel target = $region3
    $region8: #{tpu_custom_call.1} parent=1 // loop_exit
      _
    %481 = vsyncpa [#allocation3], 1
    %s482 = scalar_lea.sflag [#allocation3], 1
    %483 = vsyncpa %s482, 1
    %484 = vsyncpa [#allocation4], 1
    %s485 = scalar_lea.sflag [#allocation4], 1
    %486 = vsyncpa %s485, 1

</llo_original>
